<compile_context>
chip_gen: v6e
topology: v6e:2x2x1
jax: 0.10.0
libtpu: 0.0.40
codegen_flags: <defaults>
</compile_context>

<pallas_src>
import functools

import jax
import jax.numpy as jnp
from jax.experimental import pallas as pl
from jax.experimental.pallas import tpu as pltpu

CONFIG = {
    "emb_dim": 128,        # small but lane-dense (multiple of 128)
    "context_length": 8,
    "dtype": jnp.float32,
}
EPS = 1e-7

_DEFAULT_VMEM_CAP = 64 << 20   # fallback if get_tpu_info() is unavailable


def _round_up(x, m):
    return ((x + m - 1) // m) * m


def _sublane_multiple(dtype):
    itemsize = jnp.dtype(dtype).itemsize
    if itemsize >= 4:
        return 8
    if itemsize == 2:
        return 16
    return 32


def rmsnorm_kernel(x_ref, g_ref, o_ref, *, eps, inv_d):
    # x_ref: (tm, Dp) rows block; g_ref: (1, Dp) gamma broadcast over rows.
    x = x_ref[...].astype(jnp.float32)
    g = g_ref[...].astype(jnp.float32)
    # mean(x^2) over the TRUE feature count D (padded columns are zero and do
    # not contribute to the sum).
    ms = jnp.sum(x * x, axis=-1, keepdims=True) * inv_d      # (tm, 1)
    inv = jax.lax.rsqrt(ms + eps)                             # EUP rsqrt
    o_ref[...] = (x * inv * g).astype(o_ref.dtype)            # VPU, broadcasts


def rmsnorm_forward(x, gamma, *, eps=EPS, target_block_bytes=4 << 20):
    """x: (..., D), gamma: (D,). Returns same shape/dtype as x."""
    orig_shape = x.shape
    D = orig_shape[-1]
    assert gamma.shape == (D,)
    dtype = x.dtype
    itemsize = jnp.dtype(dtype).itemsize
    sub = _sublane_multiple(dtype)

    # Lane-dense feature dim (pad to a multiple of 128 if needed).
    Dp = _round_up(D, 128)

    x2 = x.reshape(-1, D)                # fold batch/seq into the sublane axis
    R = x2.shape[0]

    # Per-generation VMEM budget with headroom under physical capacity
    # (v7x: 64 MiB physical -> ~44 MiB budget; v5e/v6e: 128 MiB -> ~89 MiB).
    try:
        vmem_cap = int(pltpu.get_tpu_info().vmem_capacity_bytes)
    except Exception:
        vmem_cap = _DEFAULT_VMEM_CAP
    vmem_budget = int(vmem_cap * 0.70)

    # Byte-budget row tile: ~target_block_bytes of x per grid step, rounded to
    # the sublane multiple, capped so the double-buffered in+out blocks plus
    # the f32 working set fit the VMEM budget.
    row_bytes = Dp * itemsize
    tm = max(sub, (target_block_bytes // row_bytes) // sub * sub)
    vmem_per_row = 4 * row_bytes + 2 * Dp * 4     # 2x(in+out) + f32 temps
    max_tm = max(sub, (vmem_budget // vmem_per_row) // sub * sub)
    tm = min(tm, max_tm)
    # TODO(synk): for extreme D where even tm=sub rows exceed the VMEM budget,
    # split D over a second "arbitrary" grid axis with a scratch sum-of-squares
    # accumulator + pl.when finalize; unnecessary at these sizes.

    # Don't over-tile tiny inputs.
    tm = min(tm, _round_up(R, sub))

    # Prefer an even grid length (>1) so v7x's two TensorCores split the work.
    grid_n = pl.cdiv(R, tm)
    if grid_n > 1 and grid_n % 2 == 1:
        tm_even = _round_up(pl.cdiv(R, grid_n + 1), sub)
        if tm_even >= sub and pl.cdiv(R, tm_even) % 2 == 0:
            tm = tm_even
            grid_n = pl.cdiv(R, tm)

    Rp = grid_n * tm

    # Zero-pad rows / features; padded rows are all-zero (eps keeps rsqrt
    # finite, output padding is exactly zero) and are sliced off afterwards.
    if Rp != R or Dp != D:
        x2 = jnp.pad(x2, ((0, Rp - R), (0, Dp - D)))
    gamma2 = gamma.reshape(1, D)
    if Dp != D:
        gamma2 = jnp.pad(gamma2, ((0, 0), (0, Dp - D)))

    kernel = functools.partial(rmsnorm_kernel, eps=eps, inv_d=1.0 / D)

    # Explicit scoped-VMEM limit: double-buffered in+out blocks, f32 temps,
    # gamma, plus headroom; clamped to [16 MiB, per-generation budget].
    needed = (4 * tm * row_bytes          # 2 x (in block + out block)
              + 2 * tm * Dp * 4           # f32 intermediates
              + 4 * Dp * itemsize         # gamma (double-buffered)
              + (2 << 20))                # headroom / internal scratch
    vmem_limit = int(min(vmem_budget, max(needed, 16 << 20)))

    cost = pl.CostEstimate(
        flops=4 * Rp * Dp,                # square, reduce-add, scale, gamma-mul
        transcendentals=Rp,               # one rsqrt per row
        bytes_accessed=(2 * Rp * Dp + Dp) * itemsize,
    )

    out = pl.pallas_call(
        kernel,
        out_shape=jax.ShapeDtypeStruct((Rp, Dp), dtype),
        grid=(grid_n,),
        in_specs=[
            pl.BlockSpec((tm, Dp), lambda i: (i, 0)),   # X rows block
            pl.BlockSpec((1, Dp), lambda i: (0, 0)),    # gamma (replicated)
        ],
        out_specs=pl.BlockSpec((tm, Dp), lambda i: (i, 0)),
        compiler_params=pltpu.CompilerParams(
            dimension_semantics=("parallel",),
            vmem_limit_bytes=vmem_limit),
        cost_estimate=cost,
    )(x2, gamma2)

    if Rp != R or Dp != D:
        out = out[:R, :D]
    return out.reshape(orig_shape)


def rmsnorm_reference(x, gamma, *, eps=EPS):
    """Pure-JAX reference matching the PyTorch forward semantics."""
    xf = x.astype(jnp.float32)
    rms = xf / jnp.sqrt(eps + jnp.mean(xf * xf, axis=-1, keepdims=True))
    return (rms * gamma.astype(jnp.float32)).astype(x.dtype)


if __name__ == "__main__":
    cfg = CONFIG
    B, S, D = 2, cfg["context_length"], cfg["emb_dim"]
    dtype = cfg["dtype"]

    key = jax.random.PRNGKey(0)
    kx, kg, kx2, kg2 = jax.random.split(key, 4)

    # Main small-shape run (lane-dense D, divisible rows).
    x = jax.random.normal(kx, (B, S, D), dtype=dtype)
    gamma = jnp.ones((D,), dtype=dtype) + 0.01 * jax.random.normal(kg, (D,), dtype=dtype)

    out = rmsnorm_forward(x, gamma)
    out = jax.block_until_ready(out)

    ref = rmsnorm_reference(x, gamma)
    assert out.shape == (B, S, D)
    assert out.dtype == x.dtype
    assert jnp.allclose(out, ref, atol=1e-5, rtol=1e-5), "mismatch vs reference"

    # Robustness check: awkward shape (R % 8 != 0, D % 128 != 0) in bf16 to
    # exercise the row/feature padding and sublane-multiple tile rounding.
    B2, S2, D2 = 3, 7, 96
    xb = jax.random.normal(kx2, (B2, S2, D2), dtype=jnp.bfloat16)
    gb = (jnp.ones((D2,), jnp.float32)
          + 0.01 * jax.random.normal(kg2, (D2,), jnp.float32)).astype(jnp.bfloat16)
    outb = jax.block_until_ready(rmsnorm_forward(xb, gb))
    refb = rmsnorm_reference(xb, gb)
    assert outb.shape == (B2, S2, D2) and outb.dtype == jnp.bfloat16
    assert jnp.allclose(outb.astype(jnp.float32), refb.astype(jnp.float32),
                        atol=2e-2, rtol=2e-2), "bf16 padded-path mismatch"

    print("KERNEL_OK")
</pallas_src>

<mosaic_0001>
module attributes {stable_mosaic.version = 11 : i64} {
  func.func @rmsnorm_kernel(%arg0: i32, %arg1: memref<16x128xf32, #tpu.memory_space<vmem>>, %arg2: memref<1x128xf32, #tpu.memory_space<vmem>>, %arg3: memref<16x128xf32, #tpu.memory_space<vmem>>) attributes {dimension_semantics = [#tpu.dimension_semantics<parallel>], iteration_bounds = array<i64: 1>, scalar_prefetch = 0 : i64, scratch_operands = 0 : i64, tpu.core_type = #tpu.core_type<tc>, window_params = [{transform_indices = @transform_0, window_bounds = array<i64: 16, 128>}, {pipeline_mode = #tpu.pipeline_mode<synchronous>, transform_indices = @transform_1, window_bounds = array<i64: 1, 128>}, {transform_indices = @transform_2, window_bounds = array<i64: 16, 128>}]} {
    %c0 = arith.constant 0 : index
    %c0_0 = arith.constant 0 : index
    %0 = vector.load %arg1[%c0, %c0_0] : memref<16x128xf32, #tpu.memory_space<vmem>>, vector<16x128xf32>
    %c0_1 = arith.constant 0 : index
    %c0_2 = arith.constant 0 : index
    %1 = vector.load %arg2[%c0_1, %c0_2] : memref<1x128xf32, #tpu.memory_space<vmem>>, vector<1x128xf32>
    %2 = arith.mulf %0, %0 : vector<16x128xf32>
    %cst = arith.constant dense<0.000000e+00> : vector<16xf32>
    %3 = vector.multi_reduction <add>, %2, %cst [1] : vector<16x128xf32> to vector<16xf32>
    %4 = vector.shape_cast %3 : vector<16xf32> to vector<16x1xf32>
    %cst_3 = arith.constant 7.812500e-03 : f32
    %5 = vector.broadcast %cst_3 : f32 to vector<16x1xf32>
    %6 = arith.mulf %4, %5 : vector<16x1xf32>
    %cst_4 = arith.constant 1.000000e-07 : f32
    %7 = vector.broadcast %cst_4 : f32 to vector<16x1xf32>
    %8 = arith.addf %6, %7 : vector<16x1xf32>
    %9 = math.rsqrt %8 : vector<16x1xf32>
    %10 = vector.broadcast %9 : vector<16x1xf32> to vector<16x128xf32>
    %11 = arith.mulf %0, %10 : vector<16x128xf32>
    %12 = vector.broadcast %1 : vector<1x128xf32> to vector<16x128xf32>
    %13 = arith.mulf %11, %12 : vector<16x128xf32>
    %c0_5 = arith.constant 0 : index
    %c0_6 = arith.constant 0 : index
    %14 = vector.load %arg3[%c0_5, %c0_6] : memref<16x128xf32, #tpu.memory_space<vmem>>, vector<16x128xf32>
    tpu.vector_store %arg3[%c0_5, %c0_6], %13 {strides = array<i32>} : memref<16x128xf32, #tpu.memory_space<vmem>>, vector<16x128xf32>,
    return
  }
  func.func @transform_0(%arg0: i32) -> (i32, i32) {
    %c0_i32 = arith.constant 0 : i32
    %c0_i32_0 = arith.constant 0 : i32
    return %arg0, %c0_i32 : i32, i32
  }
  func.func @transform_1(%arg0: i32) -> (i32, i32) {
    %c0_i32 = arith.constant 0 : i32
    %c0_i32_0 = arith.constant 0 : i32
    %c0_i32_1 = arith.constant 0 : i32
    return %c0_i32, %c0_i32_0 : i32, i32
  }
  func.func @transform_2(%arg0: i32) -> (i32, i32) {
    %c0_i32 = arith.constant 0 : i32
    %c0_i32_0 = arith.constant 0 : i32
    return %arg0, %c0_i32 : i32, i32
  }
}

</mosaic_0001>

<llo_original>
// kernel: tpu_custom_call.1
$region0: #{tpu_custom_call.1}
  #allocation0 [shape = 'u32[]', space=smem, size = 0x4, offset = 0x4, fixed_abs, tag = 'smem constant byte address 0x4 - core index']
  #allocation1 [shape = 'u32[144,128]{1,0:T(1,128)}', space=vmem, size = 0x12000, scoped, tag = 'internal scratch']
  %s0 = inlined_call_operand.hbm [shape: f32[16,128], index: 0, kind: input, shape index: {}]
  %s1 = inlined_call_operand.vmem [shape: f32[1,128], index: 1, kind: input, shape index: {}]
  %s2 = inlined_call_operand.hbm [shape: f32[16,128], index: 2, kind: output, shape index: {}]
  %s3 = sld [smem:[#allocation0]]
  $region22: #{tpu_custom_call.1} parent=0
    _
  %s5 = ssub.s32 1, %s3
  %s6 = scalar_select 0, %s5, %s3
  $region1: #{tpu_custom_call.1} parent=0
    #allocation2 [shape = 'u8[8192]{0}', space=vmem, size = 0x2000, scoped, tag = 'input window, operand 0, single buffered']
    #allocation3 [shape = 's32[1]{0}', space=sflag, size = 0x4, scoped, tag = 'scoped memory for tpu_custom_call.1']
    #allocation4 [shape = 's32[1]{0}', space=sflag, size = 0x4, scoped, tag = 'scoped memory for tpu_custom_call.1']
    #allocation5 [shape = 'u8[8192]{0}', space=vmem, size = 0x2000, scoped, tag = 'output window, operand 0, single buffered']
    %7 = vsyncpa [#allocation3], 0
    %8 = vsyncpa [#allocation4], 0
    // Predicated region
    $region2: #{tpu_custom_call.1} parent=1 // pred_check
      _
    $region3: #{tpu_custom_call.1} parent=1 // pred_check_branch
      %10 = sbr.rel (0) target = $region5
    $region4: #{tpu_custom_call.1} parent=1 // pred_region
      %s12 = ssub.s32 256, 256
      %13 = vsyncadd [#allocation3], %s12
      %s14 = sshll.u32 [#allocation2], 4
      %s15 = int_to_ptr.vmem [resolvable:$true] %s14
      %20 = dma.hbm_to_vmem [thread:$0]  %s0, 256, %s15, [#allocation3], 128, 128, 8
    $region5: #{tpu_custom_call.1} parent=1 // pred_fallthru
      _
    // Predicated region
    $region6: #{tpu_custom_call.1} parent=1 // pred_check
      _
    $region7: #{tpu_custom_call.1} parent=1 // pred_check_branch
      %22 = sbr.rel (0) target = $region9
    $region8: #{tpu_custom_call.1} parent=1 // pred_region
      _
    $region9: #{tpu_custom_call.1} parent=1 // pred_fallthru
      _
    // Predicated region
    $region10: #{tpu_custom_call.1} parent=1 // pred_check
      _
    $region11: #{tpu_custom_call.1} parent=1 // pred_check_branch
      %24 = sbr.rel (0) target = $region13
    $region12: #{tpu_custom_call.1} parent=1 // pred_region
      %25 = dma.done [#allocation3], 256
    $region13: #{tpu_custom_call.1} parent=1 // pred_fallthru
      _
    %v26 = vld [vmem:[#allocation2] sm:$0xff]
    %v27 = vld [vmem:[#allocation2 + $0x8] sm:$0xff]
    %v28 = vld [vmem:[%s1] sm:$0x1]
    %v29 = vmul.f32 %v26, %v26
    %v30 = vmul.f32 %v27, %v27
    %31 = vadd.xlane.f32.xlu0 %v29
    %v32 = vpop.xlane.xlu0 %31
    %33 = vadd.xlane.f32.xlu0 %v30
    %v34 = vpop.xlane.xlu0 %33
    %v35 = vmul.f32 %v32, 0.0078125
    %v36 = vmul.f32 %v34, 0.0078125
    %v37 = vadd.f32 %v35, 1e-07
    %v38 = vadd.f32 %v36, 1e-07
    %v39 = vrsqrt.pop %v37
    %v40 = vrsqrt.pop %v38
    %v41 = vmul.f32 %v26, %v39
    %v42 = vmul.f32 %v27, %v40
    %v44 = vlaneseq
    %v45 = vshrl.u32 %v44, 7
    %v46 = vsub.s32 0, %v45
    %v47 = vrot.slane %v28, %v46
    %v49 = vmul.f32 %v41, %v47
    %v50 = vmul.f32 %v42, %v47
    %51 = vst [vmem:[#allocation5] sm:$0xff] %v49
    %52 = vst [vmem:[#allocation5 + $0x8] sm:$0xff] %v50
    // Predicated region
    $region14: #{tpu_custom_call.1} parent=1 // pred_check
      _
    $region15: #{tpu_custom_call.1} parent=1 // pred_check_branch
      %54 = sbr.rel (0) target = $region17
    $region16: #{tpu_custom_call.1} parent=1 // pred_region
      %s56 = ssub.s32 256, 256
      %57 = vsyncadd [#allocation4], %s56
      %s58 = sshll.u32 [#allocation5], 4
      %s59 = int_to_ptr.vmem [resolvable:$true] %s58
      %64 = dma.vmem_to_hbm [thread:$0]  %s59, 256, %s2, [#allocation4], 128, 128, 8
    $region17: #{tpu_custom_call.1} parent=1 // pred_fallthru
      _
    // Predicated region
    $region18: #{tpu_custom_call.1} parent=1 // pred_check
      _
    $region19: #{tpu_custom_call.1} parent=1 // pred_check_branch
      %66 = sbr.rel (0) target = $region21
    $region20: #{tpu_custom_call.1} parent=1 // pred_region
      %67 = dma.done [#allocation4], 256
    $region21: #{tpu_custom_call.1} parent=1 // pred_fallthru
      _
    %68 = vsyncpa [#allocation3], 1
    %69 = vsyncpa [#allocation4], 1

</llo_original>
